<compile_context>
chip_gen: v5e
topology: v5e:2x2
jax: 0.10.0
libtpu: 0.0.40
codegen_flags: <defaults>
</compile_context>

<pallas_src>
import jax
import jax.numpy as jnp
from jax.experimental import pallas as pl
from jax.experimental.pallas import tpu as pltpu


# ---------------------------------------------------------------------------
# Fused kernel: 7x7/s2 conv (4 row-pair matmuls) + folded BN + ReLU + 3x3/s2/p1 maxpool.
#   x_ref : (Hp2*W2, 84)  bf16  packed padded image (row-pairs x col-pairs)
#   w_ref : (4, 84, 128)  bf16  4 row-pair taps, pixel-pair block-diagonal weights
#   s/b   : (1, 128)      f32   folded BN scale / bias (duplicated per pixel pair)
#   o_ref : (TP, W2, 64)  f32   pooled output rows of this block
# ---------------------------------------------------------------------------
def _make_fused_kernel(TH, TP, W2, CL, Cout):
    def kernel(x_ref, w_ref, s_ref, b_ref, o_ref):
        rblk = pl.program_id(1)
        base = rblk * TH                       # first conv output row of this block

        def conv_rows(start_row, nrows):
            # conv rows [start_row, start_row+nrows) -> (nrows*W2, 128) post-BN-ReLU
            acc = None
            for d in range(4):                 # 4 input row-pairs cover the 7 kernel rows
                start = (start_row + d) * W2
                if W2 % 8 == 0:
                    start = pl.multiple_of(start, 8)
                lhs = x_ref[pl.ds(start, nrows * W2), :]             # (nrows*W2, 84) bf16
                part = jnp.dot(lhs, w_ref[d], preferred_element_type=jnp.float32)
                acc = part if acc is None else acc + part
            return jnp.maximum(acc * s_ref[...] + b_ref[...], 0.0)   # folded BN + ReLU

        # main conv rows base .. base+TH-1 (kept in vregs/VMEM, never written to HBM)
        y = conv_rows(base, TH)                                      # (TH*W2, 128) f32
        # halo conv row base-1 (recomputed); zero at the top image border
        halo = conv_rows(jnp.maximum(base - 1, 0), 1)                # (W2, 128) f32
        halo = halo * (rblk > 0).astype(jnp.float32)                 # 0 is exact post-ReLU

        # fused 3x3 / stride-2 / pad-1 maxpool
        zrow = jnp.zeros((1, Cout), jnp.float32)
        for pp in range(TP):                   # pool row pp uses conv rows 2pp-1,2pp,2pp+1
            r0 = halo if pp == 0 else y[(2 * pp - 1) * W2:(2 * pp) * W2]
            r1 = y[(2 * pp) * W2:(2 * pp + 1) * W2]
            r2 = y[(2 * pp + 1) * W2:(2 * pp + 2) * W2]
            rm = jnp.maximum(jnp.maximum(r0, r1), r2)                # (W2, 128), full lanes
            e = rm[:, :Cout]                                         # conv col 2q
            o = rm[:, Cout:]                                         # conv col 2q+1
            osh = jnp.concatenate([zrow, o[:W2 - 1]], axis=0)        # conv col 2q-1 (left pad)
            o_ref[pp] = jnp.maximum(jnp.maximum(e, o), osh).astype(o_ref.dtype)
    return kernel


# ---------------------------------------------------------------------------
# Wrapper (public interface NCHW, like the PyTorch module)
# ---------------------------------------------------------------------------
def shallow_module_forward(x_nchw, w, gamma, beta, running_mean, running_var,
                           *, eps=1e-5, row_block=None):
    """x_nchw: (N, 3, H, W) f32 -> (N, 64, H//4, W//4) f32 (NCHW)."""
    N, Cin, H, W = x_nchw.shape
    Cout, _, KH, KW = w.shape                 # (64, 3, 7, 7)
    assert (KH, KW, Cin) == (7, 7, 3)
    assert H % 4 == 0 and W % 4 == 0, "spatial dims must be multiples of 4"
    # TODO(synk): odd/ragged H, W would need cdiv-tiled grids + edge masking.

    Ho, Wo = H // 2, W // 2                   # conv output size (stride 2, pad 3, k 7)
    W2 = Wo // 2                              # output pixel pairs per row (== pool width)
    Po = Ho // 2                              # pool output height
    Hp2 = Ho + 3                              # padded-input row pairs needed

    # ---- packing glue, all in bf16 (halves XLA-side HBM traffic vs v2) ----
    # xp[n, h2*W2 + t, s_j*42 + s_r*21 + kj*3 + c] = x_pad[n, 2*h2+s_r, 2*(2t+s_j)+kj, c]
    x = jnp.transpose(x_nchw.astype(jnp.bfloat16), (0, 2, 3, 1))
    x_pad = jnp.pad(x, ((0, 0), (3, 3), (3, 3), (0, 0)))             # (N, H+6, W+6, 3)
    xe = x_pad[:, 0::2, :, :]                                        # even padded rows
    xo = x_pad[:, 1::2, :, :]                                        # odd padded rows
    pieces = []
    for rows in (xe, xo):                     # row parity s_r = 0, 1
        for kj in range(KW):                  # column tap
            pieces.append(rows[:, :, kj:kj + 2 * Wo:2, :])           # (N, Hp2, Wo, 3)
    xp = jnp.stack(pieces, axis=3).reshape(N, Hp2, Wo, 2 * KW * Cin)
    xp = xp.reshape(N, Hp2 * W2, 4 * KW * Cin)                       # (N, Hp2*W2, 84) bf16
    # TODO(synk): for very large images, DMA raw padded rows (memory_space=pl.ANY) and
    # assemble the 84-wide LHS in-kernel to remove this XLA packing pass entirely.

    # ---- weights: 4 row-pair taps, pixel-pair block-diagonal, bf16 ----
    KC = KW * Cin                                                    # 21
    w_t = jnp.transpose(w, (2, 3, 1, 0)).reshape(KH, KC, Cout).astype(jnp.float32)
    w_pair = jnp.zeros((4, 2 * KC, Cout), jnp.float32)
    w_pair = w_pair.at[:, :KC, :].set(w_t[0::2])                     # ki = 0,2,4,6
    w_pair = w_pair.at[:3, KC:, :].set(w_t[1::2])                    # ki = 1,3,5
    K2, CL = 4 * KC, 2 * Cout                                        # 84, 128
    w2 = jnp.zeros((4, K2, CL), jnp.float32)
    w2 = w2.at[:, :2 * KC, :Cout].set(w_pair)
    w2 = w2.at[:, 2 * KC:, Cout:].set(w_pair)
    w2 = w2.astype(jnp.bfloat16)                                     # (4, 84, 128)

    # ---- fold BN (eval mode, running stats) into scale/bias (per pixel pair) ----
    inv_std = 1.0 / jnp.sqrt(running_var.astype(jnp.float32) + eps)
    scale = gamma.astype(jnp.float32) * inv_std
    bias = beta.astype(jnp.float32) - running_mean.astype(jnp.float32) * scale
    scale2 = jnp.concatenate([scale, scale]).reshape(1, CL)
    bias2 = jnp.concatenate([bias, bias]).reshape(1, CL)

    # ---- row block: even, divides Ho, as large as possible under a hard VMEM cap ----
    if row_block is None:
        cands = [d for d in range(2, Ho + 1, 2) if Ho % d == 0 and d * W2 <= 2048]
        TH = max(cands) if cands else 2
    else:
        TH = int(row_block)
    assert TH % 2 == 0 and Ho % TH == 0, (TH, Ho)
    TP = TH // 2
    n_row_blocks = Ho // TH

    # ---- single fused pallas_call: conv + BN + ReLU + maxpool ----
    out_nhwc = pl.pallas_call(
        _make_fused_kernel(TH, TP, W2, CL, Cout),
        out_shape=jax.ShapeDtypeStruct((N, Po, W2, Cout), jnp.float32),
        grid=(N, n_row_blocks),
        in_specs=[
            # whole packed image per batch item; re-fetched only when n changes
            pl.BlockSpec((None, Hp2 * W2, K2), lambda n, r: (n, 0, 0)),
            pl.BlockSpec((4, K2, CL), lambda n, r: (0, 0, 0)),
            pl.BlockSpec((1, CL), lambda n, r: (0, 0)),
            pl.BlockSpec((1, CL), lambda n, r: (0, 0)),
        ],
        out_specs=pl.BlockSpec((None, TP, W2, Cout), lambda n, r: (n, r, 0, 0)),
        compiler_params=pltpu.CompilerParams(
            dimension_semantics=("parallel", "parallel")),
    )(xp, w2, scale2, bias2)

    # keep the module's NCHW contract (a NHWC consumer could skip this transpose)
    return jnp.transpose(out_nhwc, (0, 3, 1, 2))


# ---------------------------------------------------------------------------
# Pure-JAX reference (bf16 conv operands, f32 accumulation — matches kernel precision)
# ---------------------------------------------------------------------------
def _reference(x_nchw, w, gamma, beta, mean, var, eps=1e-5):
    x = jnp.transpose(x_nchw, (0, 2, 3, 1))
    w_hwio = jnp.transpose(w, (2, 3, 1, 0))
    y = jax.lax.conv_general_dilated(
        x.astype(jnp.bfloat16), w_hwio.astype(jnp.bfloat16),
        window_strides=(2, 2), padding=((3, 3), (3, 3)),
        dimension_numbers=("NHWC", "HWIO", "NHWC"),
        preferred_element_type=jnp.float32)
    y = (y - mean) / jnp.sqrt(var + eps) * gamma + beta
    y = jnp.maximum(y, 0.0)
    y = jax.lax.reduce_window(
        y, -jnp.inf, jax.lax.max, window_dimensions=(1, 3, 3, 1),
        window_strides=(1, 2, 2, 1),
        padding=((0, 0), (1, 1), (1, 1), (0, 0)))
    return jnp.transpose(y, (0, 3, 1, 2))


if __name__ == "__main__":
    key = jax.random.PRNGKey(0)
    k_x, k_w, k_g, k_b, k_m, k_v = jax.random.split(key, 6)

    N, Cin, H, W = 2, 3, 32, 32
    Cout, KH, KW = 64, 7, 7

    x = jax.random.normal(k_x, (N, Cin, H, W), dtype=jnp.float32)
    w = jax.random.normal(k_w, (Cout, Cin, KH, KW), dtype=jnp.float32)
    w = w * (1.0 / jnp.sqrt(float(Cin * KH * KW)))
    gamma = jax.random.uniform(k_g, (Cout,), jnp.float32, 0.5, 1.5)
    beta = 0.1 * jax.random.normal(k_b, (Cout,), dtype=jnp.float32)
    running_mean = 0.1 * jax.random.normal(k_m, (Cout,), dtype=jnp.float32)
    running_var = jax.random.uniform(k_v, (Cout,), jnp.float32, 0.5, 1.5)
    # NOTE: BatchNorm is implemented in eval mode (running statistics), folded into a
    # per-channel scale/bias applied inside the fused kernel.

    ref = jax.block_until_ready(
        _reference(x, w, gamma, beta, running_mean, running_var))

    # multi-row-block config (exercises the inter-block halo recompute)
    out = shallow_module_forward(x, w, gamma, beta, running_mean, running_var,
                                 row_block=8)
    out = jax.block_until_ready(out)
    assert out.shape == (N, Cout, H // 4, W // 4), out.shape
    assert jnp.allclose(out, ref, atol=2e-2, rtol=2e-2), float(
        jnp.max(jnp.abs(out - ref)))

    # auto-selected (largest) row block: single block per image at this size
    out2 = jax.block_until_ready(
        shallow_module_forward(x, w, gamma, beta, running_mean, running_var))
    assert jnp.allclose(out2, ref, atol=2e-2, rtol=2e-2), float(
        jnp.max(jnp.abs(out2 - ref)))

    print("KERNEL_OK")
</pallas_src>

<mosaic_0001>
module attributes {stable_mosaic.version = 11 : i64} {
  func.func @kernel(%arg0: i32, %arg1: i32, %arg2: memref<1x152x84xbf16, #tpu.memory_space<vmem>>, %arg3: memref<4x84x128xbf16, #tpu.memory_space<vmem>>, %arg4: memref<1x128xf32, #tpu.memory_space<vmem>>, %arg5: memref<1x128xf32, #tpu.memory_space<vmem>>, %arg6: memref<1x4x8x64xf32, #tpu.memory_space<vmem>>) attributes {dimension_semantics = [#tpu.dimension_semantics<parallel>, #tpu.dimension_semantics<parallel>], iteration_bounds = array<i64: 2, 2>, scalar_prefetch = 0 : i64, scratch_operands = 0 : i64, tpu.core_type = #tpu.core_type<tc>, window_params = [{transform_indices = @transform_0, window_bounds = array<i64: 1, 152, 84>}, {pipeline_mode = #tpu.pipeline_mode<synchronous>, transform_indices = @transform_1, window_bounds = array<i64: 4, 84, 128>}, {pipeline_mode = #tpu.pipeline_mode<synchronous>, transform_indices = @transform_2, window_bounds = array<i64: 1, 128>}, {pipeline_mode = #tpu.pipeline_mode<synchronous>, transform_indices = @transform_3, window_bounds = array<i64: 1, 128>}, {transform_indices = @transform_4, window_bounds = array<i64: 1, 4, 8, 64>}]} {
    %c8_i32 = arith.constant 8 : i32
    %0 = arith.muli %arg1, %c8_i32 : i32
    %c0_i32 = arith.constant 0 : i32
    %1 = arith.addi %0, %c0_i32 : i32
    %c8_i32_0 = arith.constant 8 : i32
    %2 = arith.muli %1, %c8_i32_0 : i32
    %3 = tpu.assume_multiple %2, 8 : i32
    %c0 = arith.constant 0 : index
    %4 = arith.index_cast %3 : i32 to index
    %c0_1 = arith.constant 0 : index
    %5 = vector.load %arg2[%c0, %4, %c0_1] : memref<1x152x84xbf16, #tpu.memory_space<vmem>>, vector<1x64x84xbf16>
    %6 = vector.shape_cast %5 : vector<1x64x84xbf16> to vector<64x84xbf16>
    %c0_2 = arith.constant 0 : index
    %c0_3 = arith.constant 0 : index
    %c0_4 = arith.constant 0 : index
    %7 = vector.load %arg3[%c0_2, %c0_3, %c0_4] : memref<4x84x128xbf16, #tpu.memory_space<vmem>>, vector<1x84x128xbf16>
    %8 = vector.shape_cast %7 : vector<1x84x128xbf16> to vector<84x128xbf16>
    %cst = arith.constant dense<0.000000e+00> : vector<64x128xf32>
    %9 = tpu.matmul %6, %8, %cst {dimension_numbers = #tpu.dot_dimension_numbers<[1], [0], [0], [1], [0, 0, 1, 1], [], []>} : vector<64x84xbf16>, vector<84x128xbf16>, vector<64x128xf32> -> vector<64x128xf32>
    %c1_i32 = arith.constant 1 : i32
    %10 = arith.addi %0, %c1_i32 : i32
    %c8_i32_5 = arith.constant 8 : i32
    %11 = arith.muli %10, %c8_i32_5 : i32
    %12 = tpu.assume_multiple %11, 8 : i32
    %c0_6 = arith.constant 0 : index
    %13 = arith.index_cast %12 : i32 to index
    %c0_7 = arith.constant 0 : index
    %14 = vector.load %arg2[%c0_6, %13, %c0_7] : memref<1x152x84xbf16, #tpu.memory_space<vmem>>, vector<1x64x84xbf16>
    %15 = vector.shape_cast %14 : vector<1x64x84xbf16> to vector<64x84xbf16>
    %c1 = arith.constant 1 : index
    %c0_8 = arith.constant 0 : index
    %c0_9 = arith.constant 0 : index
    %16 = vector.load %arg3[%c1, %c0_8, %c0_9] : memref<4x84x128xbf16, #tpu.memory_space<vmem>>, vector<1x84x128xbf16>
    %17 = vector.shape_cast %16 : vector<1x84x128xbf16> to vector<84x128xbf16>
    %cst_10 = arith.constant dense<0.000000e+00> : vector<64x128xf32>
    %18 = tpu.matmul %15, %17, %cst_10 {dimension_numbers = #tpu.dot_dimension_numbers<[1], [0], [0], [1], [0, 0, 1, 1], [], []>} : vector<64x84xbf16>, vector<84x128xbf16>, vector<64x128xf32> -> vector<64x128xf32>
    %19 = arith.addf %9, %18 : vector<64x128xf32>
    %c2_i32 = arith.constant 2 : i32
    %20 = arith.addi %0, %c2_i32 : i32
    %c8_i32_11 = arith.constant 8 : i32
    %21 = arith.muli %20, %c8_i32_11 : i32
    %22 = tpu.assume_multiple %21, 8 : i32
    %c0_12 = arith.constant 0 : index
    %23 = arith.index_cast %22 : i32 to index
    %c0_13 = arith.constant 0 : index
    %24 = vector.load %arg2[%c0_12, %23, %c0_13] : memref<1x152x84xbf16, #tpu.memory_space<vmem>>, vector<1x64x84xbf16>
    %25 = vector.shape_cast %24 : vector<1x64x84xbf16> to vector<64x84xbf16>
    %c2 = arith.constant 2 : index
    %c0_14 = arith.constant 0 : index
    %c0_15 = arith.constant 0 : index
    %26 = vector.load %arg3[%c2, %c0_14, %c0_15] : memref<4x84x128xbf16, #tpu.memory_space<vmem>>, vector<1x84x128xbf16>
    %27 = vector.shape_cast %26 : vector<1x84x128xbf16> to vector<84x128xbf16>
    %cst_16 = arith.constant dense<0.000000e+00> : vector<64x128xf32>
    %28 = tpu.matmul %25, %27, %cst_16 {dimension_numbers = #tpu.dot_dimension_numbers<[1], [0], [0], [1], [0, 0, 1, 1], [], []>} : vector<64x84xbf16>, vector<84x128xbf16>, vector<64x128xf32> -> vector<64x128xf32>
    %29 = arith.addf %19, %28 : vector<64x128xf32>
    %c3_i32 = arith.constant 3 : i32
    %30 = arith.addi %0, %c3_i32 : i32
    %c8_i32_17 = arith.constant 8 : i32
    %31 = arith.muli %30, %c8_i32_17 : i32
    %32 = tpu.assume_multiple %31, 8 : i32
    %c0_18 = arith.constant 0 : index
    %33 = arith.index_cast %32 : i32 to index
    %c0_19 = arith.constant 0 : index
    %34 = vector.load %arg2[%c0_18, %33, %c0_19] : memref<1x152x84xbf16, #tpu.memory_space<vmem>>, vector<1x64x84xbf16>
    %35 = vector.shape_cast %34 : vector<1x64x84xbf16> to vector<64x84xbf16>
    %c3 = arith.constant 3 : index
    %c0_20 = arith.constant 0 : index
    %c0_21 = arith.constant 0 : index
    %36 = vector.load %arg3[%c3, %c0_20, %c0_21] : memref<4x84x128xbf16, #tpu.memory_space<vmem>>, vector<1x84x128xbf16>
    %37 = vector.shape_cast %36 : vector<1x84x128xbf16> to vector<84x128xbf16>
    %cst_22 = arith.constant dense<0.000000e+00> : vector<64x128xf32>
    %38 = tpu.matmul %35, %37, %cst_22 {dimension_numbers = #tpu.dot_dimension_numbers<[1], [0], [0], [1], [0, 0, 1, 1], [], []>} : vector<64x84xbf16>, vector<84x128xbf16>, vector<64x128xf32> -> vector<64x128xf32>
    %39 = arith.addf %29, %38 : vector<64x128xf32>
    %c0_23 = arith.constant 0 : index
    %c0_24 = arith.constant 0 : index
    %40 = vector.load %arg4[%c0_23, %c0_24] : memref<1x128xf32, #tpu.memory_space<vmem>>, vector<1x128xf32>
    %41 = vector.broadcast %40 : vector<1x128xf32> to vector<64x128xf32>
    %42 = arith.mulf %39, %41 : vector<64x128xf32>
    %c0_25 = arith.constant 0 : index
    %c0_26 = arith.constant 0 : index
    %43 = vector.load %arg5[%c0_25, %c0_26] : memref<1x128xf32, #tpu.memory_space<vmem>>, vector<1x128xf32>
    %44 = vector.broadcast %43 : vector<1x128xf32> to vector<64x128xf32>
    %45 = arith.addf %42, %44 : vector<64x128xf32>
    %cst_27 = arith.constant 0.000000e+00 : f32
    %46 = vector.broadcast %cst_27 : f32 to vector<64x128xf32>
    %47 = arith.maximumf %45, %46 : vector<64x128xf32>
    %c1_i32_28 = arith.constant 1 : i32
    %48 = arith.subi %0, %c1_i32_28 : i32
    %c0_i32_29 = arith.constant 0 : i32
    %49 = arith.maxsi %48, %c0_i32_29 : i32
    %c0_i32_30 = arith.constant 0 : i32
    %50 = arith.addi %49, %c0_i32_30 : i32
    %c8_i32_31 = arith.constant 8 : i32
    %51 = arith.muli %50, %c8_i32_31 : i32
    %52 = tpu.assume_multiple %51, 8 : i32
    %c0_32 = arith.constant 0 : index
    %53 = arith.index_cast %52 : i32 to index
    %c0_33 = arith.constant 0 : index
    %54 = vector.load %arg2[%c0_32, %53, %c0_33] : memref<1x152x84xbf16, #tpu.memory_space<vmem>>, vector<1x8x84xbf16>
    %55 = vector.shape_cast %54 : vector<1x8x84xbf16> to vector<8x84xbf16>
    %c0_34 = arith.constant 0 : index
    %c0_35 = arith.constant 0 : index
    %c0_36 = arith.constant 0 : index
    %56 = vector.load %arg3[%c0_34, %c0_35, %c0_36] : memref<4x84x128xbf16, #tpu.memory_space<vmem>>, vector<1x84x128xbf16>
    %57 = vector.shape_cast %56 : vector<1x84x128xbf16> to vector<84x128xbf16>
    %cst_37 = arith.constant dense<0.000000e+00> : vector<8x128xf32>
    %58 = tpu.matmul %55, %57, %cst_37 {dimension_numbers = #tpu.dot_dimension_numbers<[1], [0], [0], [1], [0, 0, 1, 1], [], []>} : vector<8x84xbf16>, vector<84x128xbf16>, vector<8x128xf32> -> vector<8x128xf32>
    %c1_i32_38 = arith.constant 1 : i32
    %59 = arith.addi %49, %c1_i32_38 : i32
    %c8_i32_39 = arith.constant 8 : i32
    %60 = arith.muli %59, %c8_i32_39 : i32
    %61 = tpu.assume_multiple %60, 8 : i32
    %c0_40 = arith.constant 0 : index
    %62 = arith.index_cast %61 : i32 to index
    %c0_41 = arith.constant 0 : index
    %63 = vector.load %arg2[%c0_40, %62, %c0_41] : memref<1x152x84xbf16, #tpu.memory_space<vmem>>, vector<1x8x84xbf16>
    %64 = vector.shape_cast %63 : vector<1x8x84xbf16> to vector<8x84xbf16>
    %c1_42 = arith.constant 1 : index
    %c0_43 = arith.constant 0 : index
    %c0_44 = arith.constant 0 : index
    %65 = vector.load %arg3[%c1_42, %c0_43, %c0_44] : memref<4x84x128xbf16, #tpu.memory_space<vmem>>, vector<1x84x128xbf16>
    %66 = vector.shape_cast %65 : vector<1x84x128xbf16> to vector<84x128xbf16>
    %cst_45 = arith.constant dense<0.000000e+00> : vector<8x128xf32>
    %67 = tpu.matmul %64, %66, %cst_45 {dimension_numbers = #tpu.dot_dimension_numbers<[1], [0], [0], [1], [0, 0, 1, 1], [], []>} : vector<8x84xbf16>, vector<84x128xbf16>, vector<8x128xf32> -> vector<8x128xf32>
    %68 = arith.addf %58, %67 : vector<8x128xf32>
    %c2_i32_46 = arith.constant 2 : i32
    %69 = arith.addi %49, %c2_i32_46 : i32
    %c8_i32_47 = arith.constant 8 : i32
    %70 = arith.muli %69, %c8_i32_47 : i32
    %71 = tpu.assume_multiple %70, 8 : i32
    %c0_48 = arith.constant 0 : index
    %72 = arith.index_cast %71 : i32 to index
    %c0_49 = arith.constant 0 : index
    %73 = vector.load %arg2[%c0_48, %72, %c0_49] : memref<1x152x84xbf16, #tpu.memory_space<vmem>>, vector<1x8x84xbf16>
    %74 = vector.shape_cast %73 : vector<1x8x84xbf16> to vector<8x84xbf16>
    %c2_50 = arith.constant 2 : index
    %c0_51 = arith.constant 0 : index
    %c0_52 = arith.constant 0 : index
    %75 = vector.load %arg3[%c2_50, %c0_51, %c0_52] : memref<4x84x128xbf16, #tpu.memory_space<vmem>>, vector<1x84x128xbf16>
    %76 = vector.shape_cast %75 : vector<1x84x128xbf16> to vector<84x128xbf16>
    %cst_53 = arith.constant dense<0.000000e+00> : vector<8x128xf32>
    %77 = tpu.matmul %74, %76, %cst_53 {dimension_numbers = #tpu.dot_dimension_numbers<[1], [0], [0], [1], [0, 0, 1, 1], [], []>} : vector<8x84xbf16>, vector<84x128xbf16>, vector<8x128xf32> -> vector<8x128xf32>
    %78 = arith.addf %68, %77 : vector<8x128xf32>
    %c3_i32_54 = arith.constant 3 : i32
    %79 = arith.addi %49, %c3_i32_54 : i32
    %c8_i32_55 = arith.constant 8 : i32
    %80 = arith.muli %79, %c8_i32_55 : i32
    %81 = tpu.assume_multiple %80, 8 : i32
    %c0_56 = arith.constant 0 : index
    %82 = arith.index_cast %81 : i32 to index
    %c0_57 = arith.constant 0 : index
    %83 = vector.load %arg2[%c0_56, %82, %c0_57] : memref<1x152x84xbf16, #tpu.memory_space<vmem>>, vector<1x8x84xbf16>
    %84 = vector.shape_cast %83 : vector<1x8x84xbf16> to vector<8x84xbf16>
    %c3_58 = arith.constant 3 : index
    %c0_59 = arith.constant 0 : index
    %c0_60 = arith.constant 0 : index
    %85 = vector.load %arg3[%c3_58, %c0_59, %c0_60] : memref<4x84x128xbf16, #tpu.memory_space<vmem>>, vector<1x84x128xbf16>
    %86 = vector.shape_cast %85 : vector<1x84x128xbf16> to vector<84x128xbf16>
    %cst_61 = arith.constant dense<0.000000e+00> : vector<8x128xf32>
    %87 = tpu.matmul %84, %86, %cst_61 {dimension_numbers = #tpu.dot_dimension_numbers<[1], [0], [0], [1], [0, 0, 1, 1], [], []>} : vector<8x84xbf16>, vector<84x128xbf16>, vector<8x128xf32> -> vector<8x128xf32>
    %88 = arith.addf %78, %87 : vector<8x128xf32>
    %c0_62 = arith.constant 0 : index
    %c0_63 = arith.constant 0 : index
    %89 = vector.load %arg4[%c0_62, %c0_63] : memref<1x128xf32, #tpu.memory_space<vmem>>, vector<1x128xf32>
    %90 = vector.broadcast %89 : vector<1x128xf32> to vector<8x128xf32>
    %91 = arith.mulf %88, %90 : vector<8x128xf32>
    %c0_64 = arith.constant 0 : index
    %c0_65 = arith.constant 0 : index
    %92 = vector.load %arg5[%c0_64, %c0_65] : memref<1x128xf32, #tpu.memory_space<vmem>>, vector<1x128xf32>
    %93 = vector.broadcast %92 : vector<1x128xf32> to vector<8x128xf32>
    %94 = arith.addf %91, %93 : vector<8x128xf32>
    %cst_66 = arith.constant 0.000000e+00 : f32
    %95 = vector.broadcast %cst_66 : f32 to vector<8x128xf32>
    %96 = arith.maximumf %94, %95 : vector<8x128xf32>
    %c0_i32_67 = arith.constant 0 : i32
    %97 = arith.cmpi sgt, %arg1, %c0_i32_67 : i32
    %98 = arith.extui %97 : i1 to i32
    %99 = arith.sitofp %98 : i32 to f32
    %100 = vector.broadcast %99 : f32 to vector<8x128xf32>
    %101 = arith.mulf %96, %100 : vector<8x128xf32>
    %cst_68 = arith.constant 0.000000e+00 : f32
    %102 = vector.broadcast %cst_68 : f32 to vector<1x64xf32>
    %103 = vector.extract_strided_slice %47 {offsets = [0, 0], sizes = [8, 128], strides = [1, 1]} : vector<64x128xf32> to vector<8x128xf32>
    %104 = vector.extract_strided_slice %47 {offsets = [8, 0], sizes = [8, 128], strides = [1, 1]} : vector<64x128xf32> to vector<8x128xf32>
    %105 = arith.maximumf %101, %103 : vector<8x128xf32>
    %106 = arith.maximumf %105, %104 : vector<8x128xf32>
    %107 = vector.extract_strided_slice %106 {offsets = [0, 0], sizes = [8, 64], strides = [1, 1]} : vector<8x128xf32> to vector<8x64xf32>
    %108 = vector.extract_strided_slice %106 {offsets = [0, 64], sizes = [8, 64], strides = [1, 1]} : vector<8x128xf32> to vector<8x64xf32>
    %109 = vector.extract_strided_slice %108 {offsets = [0, 0], sizes = [7, 64], strides = [1, 1]} : vector<8x64xf32> to vector<7x64xf32>
    %110 = tpu.concatenate %102, %109 in 0 : vector<1x64xf32>, vector<7x64xf32> -> vector<8x64xf32>
    %111 = arith.maximumf %107, %108 : vector<8x64xf32>
    %112 = arith.maximumf %111, %110 : vector<8x64xf32>
    %c0_69 = arith.constant 0 : index
    %c0_70 = arith.constant 0 : index
    %c0_71 = arith.constant 0 : index
    %c0_72 = arith.constant 0 : index
    %113 = vector.load %arg6[%c0_69, %c0_70, %c0_71, %c0_72] : memref<1x4x8x64xf32, #tpu.memory_space<vmem>>, vector<1x1x8x64xf32>
    %114 = vector.shape_cast %113 : vector<1x1x8x64xf32> to vector<8x64xf32>
    %115 = vector.shape_cast %112 : vector<8x64xf32> to vector<1x1x8x64xf32>
    tpu.vector_store %arg6[%c0_69, %c0_70, %c0_71, %c0_72], %115 {strides = array<i32>} : memref<1x4x8x64xf32, #tpu.memory_space<vmem>>, vector<1x1x8x64xf32>,
    %116 = vector.extract_strided_slice %47 {offsets = [8, 0], sizes = [8, 128], strides = [1, 1]} : vector<64x128xf32> to vector<8x128xf32>
    %117 = vector.extract_strided_slice %47 {offsets = [16, 0], sizes = [8, 128], strides = [1, 1]} : vector<64x128xf32> to vector<8x128xf32>
    %118 = vector.extract_strided_slice %47 {offsets = [24, 0], sizes = [8, 128], strides = [1, 1]} : vector<64x128xf32> to vector<8x128xf32>
    %119 = arith.maximumf %116, %117 : vector<8x128xf32>
    %120 = arith.maximumf %119, %118 : vector<8x128xf32>
    %121 = vector.extract_strided_slice %120 {offsets = [0, 0], sizes = [8, 64], strides = [1, 1]} : vector<8x128xf32> to vector<8x64xf32>
    %122 = vector.extract_strided_slice %120 {offsets = [0, 64], sizes = [8, 64], strides = [1, 1]} : vector<8x128xf32> to vector<8x64xf32>
    %123 = vector.extract_strided_slice %122 {offsets = [0, 0], sizes = [7, 64], strides = [1, 1]} : vector<8x64xf32> to vector<7x64xf32>
    %124 = tpu.concatenate %102, %123 in 0 : vector<1x64xf32>, vector<7x64xf32> -> vector<8x64xf32>
    %125 = arith.maximumf %121, %122 : vector<8x64xf32>
    %126 = arith.maximumf %125, %124 : vector<8x64xf32>
    %c0_73 = arith.constant 0 : index
    %c1_74 = arith.constant 1 : index
    %c0_75 = arith.constant 0 : index
    %c0_76 = arith.constant 0 : index
    %127 = vector.load %arg6[%c0_73, %c1_74, %c0_75, %c0_76] : memref<1x4x8x64xf32, #tpu.memory_space<vmem>>, vector<1x1x8x64xf32>
    %128 = vector.shape_cast %127 : vector<1x1x8x64xf32> to vector<8x64xf32>
    %129 = vector.shape_cast %126 : vector<8x64xf32> to vector<1x1x8x64xf32>
    tpu.vector_store %arg6[%c0_73, %c1_74, %c0_75, %c0_76], %129 {strides = array<i32>} : memref<1x4x8x64xf32, #tpu.memory_space<vmem>>, vector<1x1x8x64xf32>,
    %130 = vector.extract_strided_slice %47 {offsets = [24, 0], sizes = [8, 128], strides = [1, 1]} : vector<64x128xf32> to vector<8x128xf32>
    %131 = vector.extract_strided_slice %47 {offsets = [32, 0], sizes = [8, 128], strides = [1, 1]} : vector<64x128xf32> to vector<8x128xf32>
    %132 = vector.extract_strided_slice %47 {offsets = [40, 0], sizes = [8, 128], strides = [1, 1]} : vector<64x128xf32> to vector<8x128xf32>
    %133 = arith.maximumf %130, %131 : vector<8x128xf32>
    %134 = arith.maximumf %133, %132 : vector<8x128xf32>
    %135 = vector.extract_strided_slice %134 {offsets = [0, 0], sizes = [8, 64], strides = [1, 1]} : vector<8x128xf32> to vector<8x64xf32>
    %136 = vector.extract_strided_slice %134 {offsets = [0, 64], sizes = [8, 64], strides = [1, 1]} : vector<8x128xf32> to vector<8x64xf32>
    %137 = vector.extract_strided_slice %136 {offsets = [0, 0], sizes = [7, 64], strides = [1, 1]} : vector<8x64xf32> to vector<7x64xf32>
    %138 = tpu.concatenate %102, %137 in 0 : vector<1x64xf32>, vector<7x64xf32> -> vector<8x64xf32>
    %139 = arith.maximumf %135, %136 : vector<8x64xf32>
    %140 = arith.maximumf %139, %138 : vector<8x64xf32>
    %c0_77 = arith.constant 0 : index
    %c2_78 = arith.constant 2 : index
    %c0_79 = arith.constant 0 : index
    %c0_80 = arith.constant 0 : index
    %141 = vector.load %arg6[%c0_77, %c2_78, %c0_79, %c0_80] : memref<1x4x8x64xf32, #tpu.memory_space<vmem>>, vector<1x1x8x64xf32>
    %142 = vector.shape_cast %141 : vector<1x1x8x64xf32> to vector<8x64xf32>
    %143 = vector.shape_cast %140 : vector<8x64xf32> to vector<1x1x8x64xf32>
    tpu.vector_store %arg6[%c0_77, %c2_78, %c0_79, %c0_80], %143 {strides = array<i32>} : memref<1x4x8x64xf32, #tpu.memory_space<vmem>>, vector<1x1x8x64xf32>,
    %144 = vector.extract_strided_slice %47 {offsets = [40, 0], sizes = [8, 128], strides = [1, 1]} : vector<64x128xf32> to vector<8x128xf32>
    %145 = vector.extract_strided_slice %47 {offsets = [48, 0], sizes = [8, 128], strides = [1, 1]} : vector<64x128xf32> to vector<8x128xf32>
    %146 = vector.extract_strided_slice %47 {offsets = [56, 0], sizes = [8, 128], strides = [1, 1]} : vector<64x128xf32> to vector<8x128xf32>
    %147 = arith.maximumf %144, %145 : vector<8x128xf32>
    %148 = arith.maximumf %147, %146 : vector<8x128xf32>
    %149 = vector.extract_strided_slice %148 {offsets = [0, 0], sizes = [8, 64], strides = [1, 1]} : vector<8x128xf32> to vector<8x64xf32>
    %150 = vector.extract_strided_slice %148 {offsets = [0, 64], sizes = [8, 64], strides = [1, 1]} : vector<8x128xf32> to vector<8x64xf32>
    %151 = vector.extract_strided_slice %150 {offsets = [0, 0], sizes = [7, 64], strides = [1, 1]} : vector<8x64xf32> to vector<7x64xf32>
    %152 = tpu.concatenate %102, %151 in 0 : vector<1x64xf32>, vector<7x64xf32> -> vector<8x64xf32>
    %153 = arith.maximumf %149, %150 : vector<8x64xf32>
    %154 = arith.maximumf %153, %152 : vector<8x64xf32>
    %c0_81 = arith.constant 0 : index
    %c3_82 = arith.constant 3 : index
    %c0_83 = arith.constant 0 : index
    %c0_84 = arith.constant 0 : index
    %155 = vector.load %arg6[%c0_81, %c3_82, %c0_83, %c0_84] : memref<1x4x8x64xf32, #tpu.memory_space<vmem>>, vector<1x1x8x64xf32>
    %156 = vector.shape_cast %155 : vector<1x1x8x64xf32> to vector<8x64xf32>
    %157 = vector.shape_cast %154 : vector<8x64xf32> to vector<1x1x8x64xf32>
    tpu.vector_store %arg6[%c0_81, %c3_82, %c0_83, %c0_84], %157 {strides = array<i32>} : memref<1x4x8x64xf32, #tpu.memory_space<vmem>>, vector<1x1x8x64xf32>,
    return
  }
  func.func @transform_0(%arg0: i32, %arg1: i32) -> (i32, i32, i32) {
    %c0_i32 = arith.constant 0 : i32
    %c0_i32_0 = arith.constant 0 : i32
    %c0_i32_1 = arith.constant 0 : i32
    return %arg0, %c0_i32, %c0_i32_0 : i32, i32, i32
  }
  func.func @transform_1(%arg0: i32, %arg1: i32) -> (i32, i32, i32) {
    %c0_i32 = arith.constant 0 : i32
    %c0_i32_0 = arith.constant 0 : i32
    %c0_i32_1 = arith.constant 0 : i32
    %c0_i32_2 = arith.constant 0 : i32
    return %c0_i32, %c0_i32_0, %c0_i32_1 : i32, i32, i32
  }
  func.func @transform_2(%arg0: i32, %arg1: i32) -> (i32, i32) {
    %c0_i32 = arith.constant 0 : i32
    %c0_i32_0 = arith.constant 0 : i32
    %c0_i32_1 = arith.constant 0 : i32
    return %c0_i32, %c0_i32_0 : i32, i32
  }
  func.func @transform_3(%arg0: i32, %arg1: i32) -> (i32, i32) {
    %c0_i32 = arith.constant 0 : i32
    %c0_i32_0 = arith.constant 0 : i32
    %c0_i32_1 = arith.constant 0 : i32
    return %c0_i32, %c0_i32_0 : i32, i32
  }
  func.func @transform_4(%arg0: i32, %arg1: i32) -> (i32, i32, i32, i32) {
    %c0_i32 = arith.constant 0 : i32
    %c0_i32_0 = arith.constant 0 : i32
    %c0_i32_1 = arith.constant 0 : i32
    return %arg0, %arg1, %c0_i32, %c0_i32_0 : i32, i32, i32, i32
  }
}

</mosaic_0001>

<llo_original>
// kernel: tpu_custom_call.1
$region0: #{tpu_custom_call.1}
  #allocation0 [shape = 'u32[]', space=smem, size = 0x4, offset = 0x4, fixed_abs, tag = 'smem constant byte address 0x4 - core index']
  #allocation1 [shape = 'u32[72,128]{1,0:T(1,128)}', space=vmem, size = 0x9000, scoped, tag = 'internal scratch']
  %s0 = inlined_call_operand.vmem [shape: bf16[2,152,84], index: 0, kind: input, shape index: {}]
  %s1 = inlined_call_operand.vmem [shape: bf16[4,84,128], index: 1, kind: input, shape index: {}]
  %s2 = inlined_call_operand.vmem [shape: f32[1,128], index: 2, kind: input, shape index: {}]
  %s3 = inlined_call_operand.vmem [shape: f32[1,128], index: 3, kind: input, shape index: {}]
  %s4 = inlined_call_operand.hbm [shape: f32[2,8,8,64], index: 4, kind: output, shape index: {}]
  %s5 = sld [smem:[#allocation0]]
  $region49: #{tpu_custom_call.1} parent=0
    _
  %s7 = ssub.s32 1, %s5
  %s8 = scalar_select 0, %s7, %s5
  $region1: #{tpu_custom_call.1} parent=0
    #allocation2 [shape = 'u8[32768]{0}', space=vmem, size = 0x8000, scoped, tag = 'output window, operand 0']
    #allocation3 [shape = 's32[2]{0}', space=sflag, size = 0x8, scoped, tag = 'scoped memory for tpu_custom_call.1']
    %9 = vsyncpa [#allocation3], 0
    %s10 = scalar_lea.sflag [#allocation3], 1
    %11 = vsyncpa %s10, 0
    loop: start=0, step=1, limit=6
    $region2: #{tpu_custom_call.1} parent=1 // loop_pre_header
      _
    $region3: #{tpu_custom_call.1} parent=1 // loop_header
      %s13 = sphi 0, %s17
      %p14 = scmp.ge.s32.totalorder %s13, 6
      %s20 = sphi 0, %s32
      %s21 = sphi 0, %s28
      %s22 = sphi 0, %s20
      %s23 = sphi 0, %s21
      %s24 = sphi 0, %s22
      %s25 = sphi 0, %s23
      %s35 = sphi 0, %s37
      %s38 = sphi 0, %s35
      %s39 = sphi 0, %s38
      %s55 = sphi 0, %s39
      %s59 = sphi 0, %s59
      %s61 = sphi 0, %s59
      %s62 = sphi 0, %s61
      %s76 = sphi 0, %s62
      %s80 = sphi 0, %s80
      %s82 = sphi 0, %s80
      %s83 = sphi 0, %s82
      %s97 = sphi 0, %s83
      %s101 = sphi 0, %s101
      %s103 = sphi 0, %s101
      %s104 = sphi 0, %s103
      %s118 = sphi 0, %s104
      %s126 = sphi 0, %s128
      %s129 = sphi 0, %s126
      %s130 = sphi 0, %s129
      %s146 = sphi 0, %s130
    $region4: #{tpu_custom_call.1} parent=1 // loop_header_branch
      %16 = sbr.rel (%p14) target = $region8
    $region5: #{tpu_custom_call.1} parent=1 // loop_body
      %s18 = ssub.s32 %s13, 1
      %s19 = ssub.s32 %s13, 2
      %s26 = sadd.s32 1, %s21
      %p27 = scmp.ge.s32.totalorder %s26, 2
      %s28 = scalar_select %p27, 0, %s26
      %s29 = sadd.s32 1, %s20
      %s30 = scalar_select %p27, %s29, %s20
      %p31 = scmp.ge.s32.totalorder %s30, 2
      %s32 = scalar_select %p31, 0, %s30
      %s33 = ssub.s32 %s20, %s32
      %p34 = scmp.eq.s32.totalorder %s33, 0
      %s36 = sadd.s32 %s35, 1
      %s37 = scalar_select %p34, %s35, %s36
      %p40 = pneg %p34
      %p41 = scmp.eq.s32.totalorder %s13, 3
      %p42 = por %p40, %p41
      %p43 = scmp.ne.s32.totalorder %s35, %s38
      %p44 = scmp.eq.s32.totalorder %s13, 0
      %p45 = por %p43, %p44
      %p46 = scmp.ne.s32.totalorder %s35, %s38
      %p47 = scmp.eq.s32.totalorder %s18, 3
      %p48 = por %p46, %p47
      %p49 = scmp.ne.s32.totalorder %s38, %s39
      %p50 = scmp.eq.s32.totalorder %s18, 0
      %p51 = por %p49, %p50
      %p52 = scmp.ne.s32.totalorder %s38, %s39
      %p53 = scmp.eq.s32.totalorder %s19, 3
      %p54 = por %p52, %p53
      %p56 = scmp.ne.s32.totalorder %s39, %s55
      %p57 = scmp.eq.s32.totalorder %s19, 0
      %p58 = por %p56, %p57
      %s60 = sadd.s32 %s59, 1
      %p63 = scmp.eq.s32.totalorder %s13, 3
      %p64 = scmp.ne.s32.totalorder %s59, %s61
      %p65 = scmp.eq.s32.totalorder %s13, 0
      %p66 = por %p64, %p65
      %p67 = scmp.ne.s32.totalorder %s59, %s61
      %p68 = scmp.eq.s32.totalorder %s18, 3
      %p69 = por %p67, %p68
      %p70 = scmp.ne.s32.totalorder %s61, %s62
      %p71 = scmp.eq.s32.totalorder %s18, 0
      %p72 = por %p70, %p71
      %p73 = scmp.ne.s32.totalorder %s61, %s62
      %p74 = scmp.eq.s32.totalorder %s19, 3
      %p75 = por %p73, %p74
      %p77 = scmp.ne.s32.totalorder %s62, %s76
      %p78 = scmp.eq.s32.totalorder %s19, 0
      %p79 = por %p77, %p78
      %s81 = sadd.s32 %s80, 1
      %p84 = scmp.eq.s32.totalorder %s13, 3
      %p85 = scmp.ne.s32.totalorder %s80, %s82
      %p86 = scmp.eq.s32.totalorder %s13, 0
      %p87 = por %p85, %p86
      %p88 = scmp.ne.s32.totalorder %s80, %s82
      %p89 = scmp.eq.s32.totalorder %s18, 3
      %p90 = por %p88, %p89
      %p91 = scmp.ne.s32.totalorder %s82, %s83
      %p92 = scmp.eq.s32.totalorder %s18, 0
      %p93 = por %p91, %p92
      %p94 = scmp.ne.s32.totalorder %s82, %s83
      %p95 = scmp.eq.s32.totalorder %s19, 3
      %p96 = por %p94, %p95
      %p98 = scmp.ne.s32.totalorder %s83, %s97
      %p99 = scmp.eq.s32.totalorder %s19, 0
      %p100 = por %p98, %p99
      %s102 = sadd.s32 %s101, 1
      %p105 = scmp.eq.s32.totalorder %s13, 3
      %p106 = scmp.ne.s32.totalorder %s101, %s103
      %p107 = scmp.eq.s32.totalorder %s13, 0
      %p108 = por %p106, %p107
      %p109 = scmp.ne.s32.totalorder %s101, %s103
      %p110 = scmp.eq.s32.totalorder %s18, 3
      %p111 = por %p109, %p110
      %p112 = scmp.ne.s32.totalorder %s103, %s104
      %p113 = scmp.eq.s32.totalorder %s18, 0
      %p114 = por %p112, %p113
      %p115 = scmp.ne.s32.totalorder %s103, %s104
      %p116 = scmp.eq.s32.totalorder %s19, 3
      %p117 = por %p115, %p116
      %p119 = scmp.ne.s32.totalorder %s104, %s118
      %p120 = scmp.eq.s32.totalorder %s19, 0
      %p121 = por %p119, %p120
      %s122 = ssub.s32 %s20, %s32
      %s123 = ssub.s32 %s21, %s28
      %s124 = sor.u32 %s122, %s123
      %p125 = scmp.eq.s32.totalorder %s124, 0
      %s127 = sadd.s32 %s126, 1
      %s128 = scalar_select %p125, %s126, %s127
      %p131 = pneg %p125
      %p132 = scmp.eq.s32.totalorder %s13, 3
      %p133 = por %p131, %p132
      %p134 = scmp.ne.s32.totalorder %s126, %s129
      %p135 = scmp.eq.s32.totalorder %s13, 0
      %p136 = por %p134, %p135
      %p137 = scmp.ne.s32.totalorder %s126, %s129
      %p138 = scmp.eq.s32.totalorder %s18, 3
      %p139 = por %p137, %p138
      %p140 = scmp.ne.s32.totalorder %s129, %s130
      %p141 = scmp.eq.s32.totalorder %s18, 0
      %p142 = por %p140, %p141
      %p143 = scmp.ne.s32.totalorder %s129, %s130
      %p144 = scmp.eq.s32.totalorder %s19, 3
      %p145 = por %p143, %p144
      %p147 = scmp.ne.s32.totalorder %s130, %s146
      %p148 = scmp.eq.s32.totalorder %s19, 0
      %p149 = por %p147, %p148
      %p150 = scmp.le.s32.totalorder 1, %s13
      %p151 = scmp.lt.s32.totalorder %s13, 5
      %p152 = pnand %p150, %p151
      %p153 = pneg %p152
      // Predicated region
      $region9: #{tpu_custom_call.1} parent=5 // pred_check
        _
      $region10: #{tpu_custom_call.1} parent=5 // pred_check_branch
        %155 = sbr.rel (%p152) target = $region12
      $region11: #{tpu_custom_call.1} parent=5 // pred_region
        %s156 = ssub.s32 %s13, 1
        // Predicated region
        $region13: #{tpu_custom_call.1} parent=11 // pred_check
          %p157 = pneg %p72
        $region14: #{tpu_custom_call.1} parent=11 // pred_check_branch
          %159 = sbr.rel (%p157) target = $region16
        $region15: #{tpu_custom_call.1} parent=11 // pred_region
          _
        $region16: #{tpu_custom_call.1} parent=11 // pred_fallthru
          _
        // Predicated region
        $region17: #{tpu_custom_call.1} parent=11 // pred_check
          %p160 = pneg %p93
        $region18: #{tpu_custom_call.1} parent=11 // pred_check_branch
          %162 = sbr.rel (%p160) target = $region20
        $region19: #{tpu_custom_call.1} parent=11 // pred_region
          _
        $region20: #{tpu_custom_call.1} parent=11 // pred_fallthru
          _
        // Predicated region
        $region21: #{tpu_custom_call.1} parent=11 // pred_check
          %p163 = pneg %p114
        $region22: #{tpu_custom_call.1} parent=11 // pred_check_branch
          %165 = sbr.rel (%p163) target = $region24
        $region23: #{tpu_custom_call.1} parent=11 // pred_region
          _
        $region24: #{tpu_custom_call.1} parent=11 // pred_fallthru
          _
      $region12: #{tpu_custom_call.1} parent=5 // pred_fallthru
        _
      %p166 = scmp.lt.s32.totalorder %s13, 4
      // Predicated region
      $region25: #{tpu_custom_call.1} parent=5 // pred_check
        %p167 = pneg %p166
      $region26: #{tpu_custom_call.1} parent=5 // pred_check_branch
        %169 = sbr.rel (%p167) target = $region28
      $region27: #{tpu_custom_call.1} parent=5 // pred_region
        // Predicated region
        $region29: #{tpu_custom_call.1} parent=27 // pred_check
          %p170 = pneg %p45
        $region30: #{tpu_custom_call.1} parent=27 // pred_check_branch
          %172 = sbr.rel (%p170) target = $region32
        $region31: #{tpu_custom_call.1} parent=27 // pred_region
          %p173 = scmp.lt.s32.totalorder %s20, 1
          %s174 = scalar_select %p173, %s20, 1
          %s175 = smul.addr %s174, 19
          %s176 = smul.addr %s175, 4
          %s177 = scalar_lea.vmem %s0, %s176
        $region32: #{tpu_custom_call.1} parent=27 // pred_fallthru
          _
      $region28: #{tpu_custom_call.1} parent=5 // pred_fallthru
        _
      %p178 = scmp.le.s32.totalorder 1, %s13
      %p179 = scmp.lt.s32.totalorder %s13, 5
      %p180 = pnand %p178, %p179
      %p181 = pneg %p180
      // Predicated region
      $region33: #{tpu_custom_call.1} parent=5 // pred_check
        _
      $region34: #{tpu_custom_call.1} parent=5 // pred_check_branch
        %183 = sbr.rel (%p180) target = $region36
      $region35: #{tpu_custom_call.1} parent=5 // pred_region
        %s184 = ssub.s32 %s13, 1
        %p185 = scmp.lt.s32.totalorder %s22, 1
        %s186 = scalar_select %p185, %s22, 1
        %s187 = smul.addr %s186, 19
        %s188 = smul.addr %s187, 4
        %s189 = scalar_lea.vmem %s0, %s188
        %p190 = pneg %p51
        %p191 = pneg %p48
        %p192 = pneg %p72
        %p193 = pneg %p69
        %p194 = pneg %p93
        %p195 = pneg %p90
        %p196 = pneg %p114
        %p197 = pneg %p111
        %p198 = pneg %p142
        %p199 = pneg %p139
        %s200 = sand.u32 %s129, 1
        %s201 = scalar_lea.sflag [#allocation3], %s200
        %s202 = sand.u32 %s129, 1
        %s203 = smul.addr %s202, 32
        %s204 = scalar_lea.vmem [#allocation2], %s203
        %p205 = scmp.lt.s32.totalorder %s22, 1
        %s206 = scalar_select %p205, %s22, 1
        %s207 = smul.addr %s206, 19
        %s208 = smul.addr %s207, 4
        %s209 = scalar_lea.vmem %s0, %s208
        %s210 = smul.u32 4, %s23
        %s212 = smul.u32 %s23, 8
        %s213 = smul.u32 %s23, 64
        %s214 = sshra.s32 %s213, 3
        %s215 = sand.u32 %s213, 7
        %s216 = smul.addr %s214, 4
        %s217 = scalar_lea.vmem %s209, %s216
        %v218 = vld [vmem:[%s217] sm:$0xf]
        %v219 = vld [vmem:[%s217 + $0x4] sm:$0xf]
        %v220 = vld [vmem:[%s217 + $0x8] sm:$0xf]
        %v221 = vld [vmem:[%s217 + $0xc] sm:$0xf]
        %v222 = vld [vmem:[%s217 + $0x10] sm:$0xf]
        %v223 = vld [vmem:[%s217 + $0x14] sm:$0xf]
        %v224 = vld [vmem:[%s217 + $0x18] sm:$0xf]
        %v225 = vld [vmem:[%s217 + $0x1c] sm:$0xf]
        %v226 = vld [vmem:[%s1] sm:$0xf]
        %v227 = vld [vmem:[%s1 + $0x4] sm:$0xf]
        %v228 = vld [vmem:[%s1 + $0x8] sm:$0xf]
        %v229 = vld [vmem:[%s1 + $0xc] sm:$0xf]
        %v230 = vld [vmem:[%s1 + $0x10] sm:$0xf]
        %v231 = vld [vmem:[%s1 + $0x14] sm:$0xf]
        %v232 = vld [vmem:[%s1 + $0x18] sm:$0xf]
        %v233 = vld [vmem:[%s1 + $0x1c] sm:$0xf]
        %v234 = vld [vmem:[%s1 + $0x20] sm:$0xf]
        %v235 = vld [vmem:[%s1 + $0x24] sm:$0xf]
        %v236 = vld [vmem:[%s1 + $0x28] sm:$0x3]
        %s237 = sadd.s32 %s212, 1
        %s238 = smul.u32 %s237, 8
        %s239 = sshra.s32 %s238, 3
        %s240 = sand.u32 %s238, 7
        %s241 = smul.addr %s239, 4
        %s242 = scalar_lea.vmem %s209, %s241
        %v243 = vld [vmem:[%s242] sm:$0xf]
        %v244 = vld [vmem:[%s242 + $0x4] sm:$0xf]
        %v245 = vld [vmem:[%s242 + $0x8] sm:$0xf]
        %v246 = vld [vmem:[%s242 + $0xc] sm:$0xf]
        %v247 = vld [vmem:[%s242 + $0x10] sm:$0xf]
        %v248 = vld [vmem:[%s242 + $0x14] sm:$0xf]
        %v249 = vld [vmem:[%s242 + $0x18] sm:$0xf]
        %v250 = vld [vmem:[%s242 + $0x1c] sm:$0xf]
        %s251 = scalar_lea.vmem %s1, 44
        %v252 = vld [vmem:[%s251] sm:$0xf]
        %v253 = vld [vmem:[%s251 + $0x4] sm:$0xf]
        %v254 = vld [vmem:[%s251 + $0x8] sm:$0xf]
        %v255 = vld [vmem:[%s251 + $0xc] sm:$0xf]
        %v256 = vld [vmem:[%s251 + $0x10] sm:$0xf]
        %v257 = vld [vmem:[%s251 + $0x14] sm:$0xf]
        %v258 = vld [vmem:[%s251 + $0x18] sm:$0xf]
        %v259 = vld [vmem:[%s251 + $0x1c] sm:$0xf]
        %v260 = vld [vmem:[%s251 + $0x20] sm:$0xf]
        %v261 = vld [vmem:[%s251 + $0x24] sm:$0xf]
        %v262 = vld [vmem:[%s251 + $0x28] sm:$0x3]
        %v271 = vunpack.c.l.b16 %v243
        %v272 = vunpack.c.l.b16 %v244
        %v273 = vunpack.c.l.b16 %v245
        %v274 = vunpack.c.l.b16 %v246
        %v275 = vunpack.c.l.b16 %v247
        %v276 = vunpack.c.l.b16 %v248
        %v277 = vunpack.c.l.b16 %v249
        %v278 = vunpack.c.l.b16 %v250
        %v279 = vpack.c.b16 %v272, %v271
        %v280 = vpack.c.b16 %v274, %v273
        %v281 = vpack.c.b16 %v276, %v275
        %v282 = vpack.c.b16 %v278, %v277
        %v294 = vunpack.c.l.b16 %v252
        %v295 = vunpack.c.l.b16 %v253
        %v296 = vunpack.c.l.b16 %v254
        %v297 = vunpack.c.l.b16 %v255
        %v298 = vunpack.c.l.b16 %v256
        %v299 = vunpack.c.l.b16 %v257
        %v300 = vunpack.c.l.b16 %v258
        %v301 = vunpack.c.l.b16 %v259
        %v302 = vunpack.c.l.b16 %v260
        %v303 = vunpack.c.l.b16 %v261
        %v304 = vunpack.c.l.b16 %v262
        %v305 = vpack.c.b16 %v295, %v294
        %v306 = vpack.c.b16 %v297, %v296
        %v307 = vpack.c.b16 %v299, %v298
        %v308 = vpack.c.b16 %v301, %v300
        %v309 = vpack.c.b16 %v303, %v302
        %v310 = vpack.c.b16 %v304, %v304
        %vm316 = vcmask 687104
        %v318 = vsel %vm316, %v279, 0
        %v321 = vsel %vm316, %v280, 0
        %v324 = vsel %vm316, %v281, 0
        %v327 = vsel %vm316, %v282, 0
        %vm329 = vcmask 1041408
        %v331 = vsel %vm329, %v310, 0
        %333 = vmatpush.bf16.msra.mxu0 0
        %334 = vmatpush.bf16.msra.mxu0 0
        %335 = vmatpush.bf16.msra.mxu0 %v331
        %336 = vmatpush.bf16.msra.mxu0 %v309
        %337 = vmatpush.bf16.msra.mxu0 %v308
        %338 = vmatpush.bf16.msra.mxu0 %v307
        %339 = vmatpush.bf16.msra.mxu0 %v306
        %340 = vmatpush.bf16.msra.mxu0 %v305
        %341 = vmatmul.bf16.gmra.mxu0 %v318
        %v342 = vpop.f32.mrf.mxu0
        %v343 = vadd.f32 0.0, %v342
        %v344 = vpop.f32.mrf.mxu0
        %v345 = vadd.f32 0.0, %v344
        %346 = vmatmul.bf16.gmra.mxu0 %v321
        %v347 = vpop.f32.mrf.mxu0
        %v348 = vadd.f32 0.0, %v347
        %v349 = vpop.f32.mrf.mxu0
        %v350 = vadd.f32 0.0, %v349
        %351 = vmatmul.bf16.gmra.mxu0 %v324
        %v352 = vpop.f32.mrf.mxu0
        %v353 = vadd.f32 0.0, %v352
        %v354 = vpop.f32.mrf.mxu0
        %v355 = vadd.f32 0.0, %v354
        %356 = vmatmul.bf16.gmra.mxu0 %v327
        %v357 = vpop.f32.mrf.mxu0
        %v358 = vadd.f32 0.0, %v357
        %v359 = vpop.f32.mrf.mxu0
        %v360 = vadd.f32 0.0, %v359
        %361 = vdwg.mxu0
        %v370 = vunpack.c.l.b16 %v218
        %v371 = vunpack.c.l.b16 %v219
        %v372 = vunpack.c.l.b16 %v220
        %v373 = vunpack.c.l.b16 %v221
        %v374 = vunpack.c.l.b16 %v222
        %v375 = vunpack.c.l.b16 %v223
        %v376 = vunpack.c.l.b16 %v224
        %v377 = vunpack.c.l.b16 %v225
        %v378 = vpack.c.b16 %v371, %v370
        %v379 = vpack.c.b16 %v373, %v372
        %v380 = vpack.c.b16 %v375, %v374
        %v381 = vpack.c.b16 %v377, %v376
        %v393 = vunpack.c.l.b16 %v226
        %v394 = vunpack.c.l.b16 %v227
        %v395 = vunpack.c.l.b16 %v228
        %v396 = vunpack.c.l.b16 %v229
        %v397 = vunpack.c.l.b16 %v230
        %v398 = vunpack.c.l.b16 %v231
        %v399 = vunpack.c.l.b16 %v232
        %v400 = vunpack.c.l.b16 %v233
        %v401 = vunpack.c.l.b16 %v234
        %v402 = vunpack.c.l.b16 %v235
        %v403 = vunpack.c.l.b16 %v236
        %v404 = vpack.c.b16 %v394, %v393
        %v405 = vpack.c.b16 %v396, %v395
        %v406 = vpack.c.b16 %v398, %v397
        %v407 = vpack.c.b16 %v400, %v399
        %v408 = vpack.c.b16 %v402, %v401
        %v409 = vpack.c.b16 %v403, %v403
        %v416 = vsel %vm316, %v378, 0
        %v419 = vsel %vm316, %v379, 0
        %v422 = vsel %vm316, %v380, 0
        %v425 = vsel %vm316, %v381, 0
        %v428 = vsel %vm329, %v409, 0
        %430 = vmatpush.bf16.msra.mxu0 0
        %431 = vmatpush.bf16.msra.mxu0 0
        %432 = vmatpush.bf16.msra.mxu0 %v428
        %433 = vmatpush.bf16.msra.mxu0 %v408
        %434 = vmatpush.bf16.msra.mxu0 %v407
        %435 = vmatpush.bf16.msra.mxu0 %v406
        %436 = vmatpush.bf16.msra.mxu0 %v405
        %437 = vmatpush.bf16.msra.mxu0 %v404
        %438 = vmatmul.bf16.gmra.mxu0 %v416
        %v439 = vpop.f32.mrf.mxu0
        %v440 = vadd.f32 %v343, %v439
        %v441 = vpop.f32.mrf.mxu0
        %v442 = vadd.f32 %v345, %v441
        %443 = vmatmul.bf16.gmra.mxu0 %v419
        %v444 = vpop.f32.mrf.mxu0
        %v445 = vadd.f32 %v348, %v444
        %v446 = vpop.f32.mrf.mxu0
        %v447 = vadd.f32 %v350, %v446
        %448 = vmatmul.bf16.gmra.mxu0 %v422
        %v449 = vpop.f32.mrf.mxu0
        %v450 = vadd.f32 %v353, %v449
        %v451 = vpop.f32.mrf.mxu0
        %v452 = vadd.f32 %v355, %v451
        %453 = vmatmul.bf16.gmra.mxu0 %v425
        %v454 = vpop.f32.mrf.mxu0
        %v455 = vadd.f32 %v358, %v454
        %v456 = vpop.f32.mrf.mxu0
        %v457 = vadd.f32 %v360, %v456
        %458 = vdwg.mxu0
        %s459 = sadd.s32 %s212, 2
        %s460 = smul.u32 %s459, 8
        %s461 = sshra.s32 %s460, 3
        %s462 = sand.u32 %s460, 7
        %s463 = smul.addr %s461, 4
        %s464 = scalar_lea.vmem %s209, %s463
        %v465 = vld [vmem:[%s464] sm:$0xf]
        %v466 = vld [vmem:[%s464 + $0x4] sm:$0xf]
        %v467 = vld [vmem:[%s464 + $0x8] sm:$0xf]
        %v468 = vld [vmem:[%s464 + $0xc] sm:$0xf]
        %v469 = vld [vmem:[%s464 + $0x10] sm:$0xf]
        %v470 = vld [vmem:[%s464 + $0x14] sm:$0xf]
        %v471 = vld [vmem:[%s464 + $0x18] sm:$0xf]
        %v472 = vld [vmem:[%s464 + $0x1c] sm:$0xf]
        %s473 = scalar_lea.vmem %s1, 88
        %v474 = vld [vmem:[%s473] sm:$0xf]
        %v475 = vld [vmem:[%s473 + $0x4] sm:$0xf]
        %v476 = vld [vmem:[%s473 + $0x8] sm:$0xf]
        %v477 = vld [vmem:[%s473 + $0xc] sm:$0xf]
        %v478 = vld [vmem:[%s473 + $0x10] sm:$0xf]
        %v479 = vld [vmem:[%s473 + $0x14] sm:$0xf]
        %v480 = vld [vmem:[%s473 + $0x18] sm:$0xf]
        %v481 = vld [vmem:[%s473 + $0x1c] sm:$0xf]
        %v482 = vld [vmem:[%s473 + $0x20] sm:$0xf]
        %v483 = vld [vmem:[%s473 + $0x24] sm:$0xf]
        %v484 = vld [vmem:[%s473 + $0x28] sm:$0x3]
        %v493 = vunpack.c.l.b16 %v465
        %v494 = vunpack.c.l.b16 %v466
        %v495 = vunpack.c.l.b16 %v467
        %v496 = vunpack.c.l.b16 %v468
        %v497 = vunpack.c.l.b16 %v469
        %v498 = vunpack.c.l.b16 %v470
        %v499 = vunpack.c.l.b16 %v471
        %v500 = vunpack.c.l.b16 %v472
        %v501 = vpack.c.b16 %v494, %v493
        %v502 = vpack.c.b16 %v496, %v495
        %v503 = vpack.c.b16 %v498, %v497
        %v504 = vpack.c.b16 %v500, %v499
        %v516 = vunpack.c.l.b16 %v474
        %v517 = vunpack.c.l.b16 %v475
        %v518 = vunpack.c.l.b16 %v476
        %v519 = vunpack.c.l.b16 %v477
        %v520 = vunpack.c.l.b16 %v478
        %v521 = vunpack.c.l.b16 %v479
        %v522 = vunpack.c.l.b16 %v480
        %v523 = vunpack.c.l.b16 %v481
        %v524 = vunpack.c.l.b16 %v482
        %v525 = vunpack.c.l.b16 %v483
        %v526 = vunpack.c.l.b16 %v484
        %v527 = vpack.c.b16 %v517, %v516
        %v528 = vpack.c.b16 %v519, %v518
        %v529 = vpack.c.b16 %v521, %v520
        %v530 = vpack.c.b16 %v523, %v522
        %v531 = vpack.c.b16 %v525, %v524
        %v532 = vpack.c.b16 %v526, %v526
        %v539 = vsel %vm316, %v501, 0
        %v542 = vsel %vm316, %v502, 0
        %v545 = vsel %vm316, %v503, 0
        %v548 = vsel %vm316, %v504, 0
        %v551 = vsel %vm329, %v532, 0
        %553 = vmatpush.bf16.msra.mxu0 0
        %554 = vmatpush.bf16.msra.mxu0 0
        %555 = vmatpush.bf16.msra.mxu0 %v551
        %556 = vmatpush.bf16.msra.mxu0 %v531
        %557 = vmatpush.bf16.msra.mxu0 %v530
        %558 = vmatpush.bf16.msra.mxu0 %v529
        %559 = vmatpush.bf16.msra.mxu0 %v528
        %560 = vmatpush.bf16.msra.mxu0 %v527
        %561 = vmatmul.bf16.gmra.mxu0 %v539
        %v562 = vpop.f32.mrf.mxu0
        %v563 = vadd.f32 0.0, %v562
        %v564 = vpop.f32.mrf.mxu0
        %v565 = vadd.f32 0.0, %v564
        %566 = vmatmul.bf16.gmra.mxu0 %v542
        %v567 = vpop.f32.mrf.mxu0
        %v568 = vadd.f32 0.0, %v567
        %v569 = vpop.f32.mrf.mxu0
        %v570 = vadd.f32 0.0, %v569
        %571 = vmatmul.bf16.gmra.mxu0 %v545
        %v572 = vpop.f32.mrf.mxu0
        %v573 = vadd.f32 0.0, %v572
        %v574 = vpop.f32.mrf.mxu0
        %v575 = vadd.f32 0.0, %v574
        %576 = vmatmul.bf16.gmra.mxu0 %v548
        %v577 = vpop.f32.mrf.mxu0
        %v578 = vadd.f32 0.0, %v577
        %v579 = vpop.f32.mrf.mxu0
        %v580 = vadd.f32 0.0, %v579
        %581 = vdwg.mxu0
        %v582 = vadd.f32 %v440, %v563
        %v583 = vadd.f32 %v442, %v565
        %v584 = vadd.f32 %v445, %v568
        %v585 = vadd.f32 %v447, %v570
        %v586 = vadd.f32 %v450, %v573
        %v587 = vadd.f32 %v452, %v575
        %v588 = vadd.f32 %v455, %v578
        %v589 = vadd.f32 %v457, %v580
        %s590 = sadd.s32 %s212, 3
        %s591 = smul.u32 %s590, 8
        %s592 = sshra.s32 %s591, 3
        %s593 = sand.u32 %s591, 7
        %s594 = smul.addr %s592, 4
        %s595 = scalar_lea.vmem %s209, %s594
        %v596 = vld [vmem:[%s595] sm:$0xf]
        %v597 = vld [vmem:[%s595 + $0x4] sm:$0xf]
        %v598 = vld [vmem:[%s595 + $0x8] sm:$0xf]
        %v599 = vld [vmem:[%s595 + $0xc] sm:$0xf]
        %v600 = vld [vmem:[%s595 + $0x10] sm:$0xf]
        %v601 = vld [vmem:[%s595 + $0x14] sm:$0xf]
        %v602 = vld [vmem:[%s595 + $0x18] sm:$0xf]
        %v603 = vld [vmem:[%s595 + $0x1c] sm:$0xf]
        %s604 = scalar_lea.vmem %s1, 132
        %v605 = vld [vmem:[%s604] sm:$0xf]
        %v606 = vld [vmem:[%s604 + $0x4] sm:$0xf]
        %v607 = vld [vmem:[%s604 + $0x8] sm:$0xf]
        %v608 = vld [vmem:[%s604 + $0xc] sm:$0xf]
        %v609 = vld [vmem:[%s604 + $0x10] sm:$0xf]
        %v610 = vld [vmem:[%s604 + $0x14] sm:$0xf]
        %v611 = vld [vmem:[%s604 + $0x18] sm:$0xf]
        %v612 = vld [vmem:[%s604 + $0x1c] sm:$0xf]
        %v613 = vld [vmem:[%s604 + $0x20] sm:$0xf]
        %v614 = vld [vmem:[%s604 + $0x24] sm:$0xf]
        %v615 = vld [vmem:[%s604 + $0x28] sm:$0x3]
        %v624 = vunpack.c.l.b16 %v596
        %v625 = vunpack.c.l.b16 %v597
        %v626 = vunpack.c.l.b16 %v598
        %v627 = vunpack.c.l.b16 %v599
        %v628 = vunpack.c.l.b16 %v600
        %v629 = vunpack.c.l.b16 %v601
        %v630 = vunpack.c.l.b16 %v602
        %v631 = vunpack.c.l.b16 %v603
        %v632 = vpack.c.b16 %v625, %v624
        %v633 = vpack.c.b16 %v627, %v626
        %v634 = vpack.c.b16 %v629, %v628
        %v635 = vpack.c.b16 %v631, %v630
        %v647 = vunpack.c.l.b16 %v605
        %v648 = vunpack.c.l.b16 %v606
        %v649 = vunpack.c.l.b16 %v607
        %v650 = vunpack.c.l.b16 %v608
        %v651 = vunpack.c.l.b16 %v609
        %v652 = vunpack.c.l.b16 %v610
        %v653 = vunpack.c.l.b16 %v611
        %v654 = vunpack.c.l.b16 %v612
        %v655 = vunpack.c.l.b16 %v613
        %v656 = vunpack.c.l.b16 %v614
        %v657 = vunpack.c.l.b16 %v615
        %v658 = vpack.c.b16 %v648, %v647
        %v659 = vpack.c.b16 %v650, %v649
        %v660 = vpack.c.b16 %v652, %v651
        %v661 = vpack.c.b16 %v654, %v653
        %v662 = vpack.c.b16 %v656, %v655
        %v663 = vpack.c.b16 %v657, %v657
        %v670 = vsel %vm316, %v632, 0
        %v673 = vsel %vm316, %v633, 0
        %v676 = vsel %vm316, %v634, 0
        %v679 = vsel %vm316, %v635, 0
        %v682 = vsel %vm329, %v663, 0
        %684 = vmatpush.bf16.msra.mxu0 0
        %685 = vmatpush.bf16.msra.mxu0 0
        %686 = vmatpush.bf16.msra.mxu0 %v682
        %687 = vmatpush.bf16.msra.mxu0 %v662
        %688 = vmatpush.bf16.msra.mxu0 %v661
        %689 = vmatpush.bf16.msra.mxu0 %v660
        %690 = vmatpush.bf16.msra.mxu0 %v659
        %691 = vmatpush.bf16.msra.mxu0 %v658
        %692 = vmatmul.bf16.gmra.mxu0 %v670
        %v693 = vpop.f32.mrf.mxu0
        %v694 = vadd.f32 0.0, %v693
        %v695 = vpop.f32.mrf.mxu0
        %v696 = vadd.f32 0.0, %v695
        %697 = vmatmul.bf16.gmra.mxu0 %v673
        %v698 = vpop.f32.mrf.mxu0
        %v699 = vadd.f32 0.0, %v698
        %v700 = vpop.f32.mrf.mxu0
        %v701 = vadd.f32 0.0, %v700
        %702 = vmatmul.bf16.gmra.mxu0 %v676
        %v703 = vpop.f32.mrf.mxu0
        %v704 = vadd.f32 0.0, %v703
        %v705 = vpop.f32.mrf.mxu0
        %v706 = vadd.f32 0.0, %v705
        %707 = vmatmul.bf16.gmra.mxu0 %v679
        %v708 = vpop.f32.mrf.mxu0
        %v709 = vadd.f32 0.0, %v708
        %v710 = vpop.f32.mrf.mxu0
        %v711 = vadd.f32 0.0, %v710
        %712 = vdwg.mxu0
        %v713 = vadd.f32 %v582, %v694
        %v714 = vadd.f32 %v583, %v696
        %v715 = vadd.f32 %v584, %v699
        %v716 = vadd.f32 %v585, %v701
        %v717 = vadd.f32 %v586, %v704
        %v718 = vadd.f32 %v587, %v706
        %v719 = vadd.f32 %v588, %v709
        %v720 = vadd.f32 %v589, %v711
        %v721 = vld [vmem:[%s2] sm:$0x1]
        %v723 = vperm.slane %v721, 0
        %v725 = vmul.f32 %v713, %v723
        %v726 = vmul.f32 %v714, %v723
        %v727 = vmul.f32 %v715, %v723
        %v728 = vmul.f32 %v716, %v723
        %v729 = vmul.f32 %v717, %v723
        %v730 = vmul.f32 %v718, %v723
        %v731 = vmul.f32 %v719, %v723
        %v732 = vmul.f32 %v720, %v723
        %v733 = vld [vmem:[%s3] sm:$0x1]
        %v735 = vperm.slane %v733, 0
        %v737 = vadd.f32 %v725, %v735
        %v738 = vadd.f32 %v726, %v735
        %v739 = vadd.f32 %v727, %v735
        %v740 = vadd.f32 %v728, %v735
        %v741 = vadd.f32 %v729, %v735
        %v742 = vadd.f32 %v730, %v735
        %v743 = vadd.f32 %v731, %v735
        %v744 = vadd.f32 %v732, %v735
        %v745 = vmax.f32 %v737, 0.0
        %v746 = vmax.f32 %v738, 0.0
        %v747 = vmax.f32 %v739, 0.0
        %v748 = vmax.f32 %v740, 0.0
        %v749 = vmax.f32 %v741, 0.0
        %v750 = vmax.f32 %v742, 0.0
        %v751 = vmax.f32 %v743, 0.0
        %v752 = vmax.f32 %v744, 0.0
        %s753 = ssub.s32 %s212, 1
        %p754 = scmp.gt.s32.totalorder %s753, 0
        %s755 = scalar_select %p754, %s753, 0
        %s756 = smul.u32 %s755, 8
        %s757 = sshra.s32 %s756, 3
        %s758 = sand.u32 %s756, 7
        %s759 = smul.addr %s757, 4
        %s760 = scalar_lea.vmem %s209, %s759
        %v761 = vld [vmem:[%s760] sm:$0xf]
        %s762 = sadd.s32 %s755, 1
        %s763 = smul.u32 %s762, 8
        %s764 = sshra.s32 %s763, 3
        %s765 = sand.u32 %s763, 7
        %s766 = smul.addr %s764, 4
        %s767 = scalar_lea.vmem %s209, %s766
        %v768 = vld [vmem:[%s767] sm:$0xf]
        %v770 = vsel %vm316, %v768, 0
        %772 = vmatpush.bf16.msra.mxu0 0
        %773 = vmatpush.bf16.msra.mxu0 0
        %774 = vmatpush.bf16.msra.mxu0 %v331
        %775 = vmatpush.bf16.msra.mxu0 %v309
        %776 = vmatpush.bf16.msra.mxu0 %v308
        %777 = vmatpush.bf16.msra.mxu0 %v307
        %778 = vmatpush.bf16.msra.mxu0 %v306
        %779 = vmatpush.bf16.msra.mxu0 %v305
        %780 = vmatmul.bf16.gmra.mxu0 %v770
        %v781 = vpop.f32.mrf.mxu0
        %v782 = vadd.f32 0.0, %v781
        %v783 = vpop.f32.mrf.mxu0
        %784 = vdwg.mxu0
        %v786 = vsel %vm316, %v761, 0
        %788 = vmatpush.bf16.msra.mxu0 0
        %789 = vmatpush.bf16.msra.mxu0 0
        %790 = vmatpush.bf16.msra.mxu0 %v428
        %791 = vmatpush.bf16.msra.mxu0 %v408
        %792 = vmatpush.bf16.msra.mxu0 %v407
        %793 = vmatpush.bf16.msra.mxu0 %v406
        %794 = vmatpush.bf16.msra.mxu0 %v405
        %795 = vmatpush.bf16.msra.mxu0 %v404
        %796 = vmatmul.bf16.gmra.mxu0 %v786
        %v797 = vpop.f32.mrf.mxu0
        %v798 = vadd.f32 %v782, %v797
        %v799 = vpop.f32.mrf.mxu0
        %800 = vdwg.mxu0
        %s801 = sadd.s32 %s755, 2
        %s802 = smul.u32 %s801, 8
        %s803 = sshra.s32 %s802, 3
        %s804 = sand.u32 %s802, 7
        %s805 = smul.addr %s803, 4
        %s806 = scalar_lea.vmem %s209, %s805
        %v807 = vld [vmem:[%s806] sm:$0xf]
        %v809 = vsel %vm316, %v807, 0
        %811 = vmatpush.bf16.msra.mxu0 0
        %812 = vmatpush.bf16.msra.mxu0 0
        %813 = vmatpush.bf16.msra.mxu0 %v551
        %814 = vmatpush.bf16.msra.mxu0 %v531
        %815 = vmatpush.bf16.msra.mxu0 %v530
        %816 = vmatpush.bf16.msra.mxu0 %v529
        %817 = vmatpush.bf16.msra.mxu0 %v528
        %818 = vmatpush.bf16.msra.mxu0 %v527
        %819 = vmatmul.bf16.gmra.mxu0 %v809
        %v820 = vpop.f32.mrf.mxu0
        %v821 = vadd.f32 0.0, %v820
        %v822 = vpop.f32.mrf.mxu0
        %823 = vdwg.mxu0
        %v824 = vadd.f32 %v798, %v821
        %s825 = sadd.s32 %s755, 3
        %s826 = smul.u32 %s825, 8
        %s827 = sshra.s32 %s826, 3
        %s828 = sand.u32 %s826, 7
        %s829 = smul.addr %s827, 4
        %s830 = scalar_lea.vmem %s209, %s829
        %v831 = vld [vmem:[%s830] sm:$0xf]
        %v833 = vsel %vm316, %v831, 0
        %835 = vmatpush.bf16.msra.mxu0 0
        %836 = vmatpush.bf16.msra.mxu0 0
        %837 = vmatpush.bf16.msra.mxu0 %v682
        %838 = vmatpush.bf16.msra.mxu0 %v662
        %839 = vmatpush.bf16.msra.mxu0 %v661
        %840 = vmatpush.bf16.msra.mxu0 %v660
        %841 = vmatpush.bf16.msra.mxu0 %v659
        %842 = vmatpush.bf16.msra.mxu0 %v658
        %843 = vmatmul.bf16.gmra.mxu0 %v833
        %v844 = vpop.f32.mrf.mxu0
        %v845 = vadd.f32 0.0, %v844
        %v846 = vpop.f32.mrf.mxu0
        %847 = vdwg.mxu0
        %v848 = vadd.f32 %v824, %v845
        %v849 = vmul.f32 %v848, %v723
        %v850 = vadd.f32 %v849, %v735
        %v851 = vmax.f32 %v850, 0.0
        %p852 = scmp.gt.s32.totalorder %s23, 0
        %s853 = scalar_select %p852, 1, 0
        %s854 = scvt.s32.f32 %s853
        %v855 = vstv %s854
        %v856 = vmul.f32 %v851, %v855
        %v857 = vmax.f32 %v856, %v745
        %v858 = vmax.f32 %v857, %v746
        %v860 = vrot.slane %v858, 7
        %861 = vrot.lane.b32.xlu0 %v860, 64
        %v862 = vpop.permute.xlu0 %861
        %vm864 = vcmask 1040384
        %v865 = vsel %vm864, 0.0, %v862
        %866 = vrot.lane.b32.xlu0 %v858, 64
        %v867 = vpop.permute.xlu0 %866
        %v869 = vmax.f32 %v858, %v867
        %v870 = vmax.f32 %v869, %v865
        %vm871 = vcmask 523264
        %872 = vst.msk [vmem:[%s204] sm:$0xff] %vm871, %v870
        %v873 = vmax.f32 %v746, %v747
        %v874 = vmax.f32 %v873, %v748
        %v876 = vrot.slane %v874, 7
        %877 = vrot.lane.b32.xlu0 %v876, 64
        %v878 = vpop.permute.xlu0 %877
        %v880 = vsel %vm864, 0.0, %v878
        %881 = vrot.lane.b32.xlu0 %v874, 64
        %v882 = vpop.permute.xlu0 %881
        %v884 = vmax.f32 %v874, %v882
        %v885 = vmax.f32 %v884, %v880
        %s886 = scalar_lea.vmem %s204, 8 [#allocation2]
        %887 = vst.msk [vmem:[%s886] sm:$0xff] %vm871, %v885
        %v888 = vmax.f32 %v748, %v749
        %v889 = vmax.f32 %v888, %v750
        %v891 = vrot.slane %v889, 7
        %892 = vrot.lane.b32.xlu0 %v891, 64
        %v893 = vpop.permute.xlu0 %892
        %v895 = vsel %vm864, 0.0, %v893
        %896 = vrot.lane.b32.xlu0 %v889, 64
        %v897 = vpop.permute.xlu0 %896
        %v899 = vmax.f32 %v889, %v897
        %v900 = vmax.f32 %v899, %v895
        %s901 = scalar_lea.vmem %s204, 16 [#allocation2]
        %902 = vst.msk [vmem:[%s901] sm:$0xff] %vm871, %v900
        %v903 = vmax.f32 %v750, %v751
        %v904 = vmax.f32 %v903, %v752
        %v906 = vrot.slane %v904, 7
        %907 = vrot.lane.b32.xlu0 %v906, 64
        %v908 = vpop.permute.xlu0 %907
        %v910 = vsel %vm864, 0.0, %v908
        %911 = vrot.lane.b32.xlu0 %v904, 64
        %v912 = vpop.permute.xlu0 %911
        %v914 = vmax.f32 %v904, %v912
        %v915 = vmax.f32 %v914, %v910
        %s916 = scalar_lea.vmem %s204, 24 [#allocation2]
        %917 = vst.msk [vmem:[%s916] sm:$0xff] %vm871, %v915
        %s918 = sand.u32 %s129, 1
        %s919 = scalar_lea.sflag [#allocation3], %s918
        %s920 = sand.u32 %s129, 1
        %s921 = smul.addr %s920, 32
        %s922 = scalar_lea.vmem [#allocation2], %s921
        // Predicated region
        $region37: #{tpu_custom_call.1} parent=35 // pred_check
          %p923 = pneg %p139
        $region38: #{tpu_custom_call.1} parent=35 // pred_check_branch
          %925 = sbr.rel (%p923) target = $region40
        $region39: #{tpu_custom_call.1} parent=35 // pred_region
          %s926 = smul.u32 4, %s23
          %928 = vsyncadd %s919, 0
          %s929 = smul.addr %s22, 8
          %s930 = sadd.s32 %s926, %s929
          %s931 = smul.addr %s930, 8
          %s932 = scalar_lea.hbm %s4, %s931
          %s933 = sshll.u32 %s922, 4
          %s934 = int_to_ptr.vmem [resolvable:$true] %s933
          %s935 = sshll.u32 %s932, 4
          %s936 = int_to_ptr.hbm [resolvable:$true] %s935
          %941 = dma.vmem_to_hbm [thread:$0]  %s934, 512, %s936, %s919, 128, 128, 8
        $region40: #{tpu_custom_call.1} parent=35 // pred_fallthru
          _
      $region36: #{tpu_custom_call.1} parent=5 // pred_fallthru
        _
      %p942 = scmp.le.s32.totalorder 2, %s13
      // Predicated region
      $region41: #{tpu_custom_call.1} parent=5 // pred_check
        %p943 = pneg %p942
      $region42: #{tpu_custom_call.1} parent=5 // pred_check_branch
        %945 = sbr.rel (%p943) target = $region44
      $region43: #{tpu_custom_call.1} parent=5 // pred_region
        %s946 = ssub.s32 %s13, 2
        // Predicated region
        $region45: #{tpu_custom_call.1} parent=43 // pred_check
          %p947 = pneg %p145
        $region46: #{tpu_custom_call.1} parent=43 // pred_check_branch
          %949 = sbr.rel (%p947) target = $region48
        $region47: #{tpu_custom_call.1} parent=43 // pred_region
          %s950 = sand.u32 %s130, 1
          %s951 = scalar_lea.sflag [#allocation3], %s950
          %s952 = sand.u32 %s130, 1
          %s953 = smul.addr %s952, 32
          %s954 = scalar_lea.vmem [#allocation2], %s953
          %956 = dma.done %s951, 512
        $region48: #{tpu_custom_call.1} parent=43 // pred_fallthru
          _
      $region44: #{tpu_custom_call.1} parent=5 // pred_fallthru
        _
    $region6: #{tpu_custom_call.1} parent=1 // loop_footer
      %s17 = sadd.s32 1, %s13
    $region7: #{tpu_custom_call.1} parent=1 // loop_footer_branch
      %12 = sbr.rel target = $region3
    $region8: #{tpu_custom_call.1} parent=1 // loop_exit
      _
    %957 = vsyncpa [#allocation3], 1
    %s958 = scalar_lea.sflag [#allocation3], 1
    %959 = vsyncpa %s958, 1

</llo_original>
